<compile_context>
chip_gen: v7x
topology: tpu7x:2x2x1
jax: 0.10.0
libtpu: 0.0.40
codegen_flags: <defaults>
</compile_context>

<pallas_src>
import functools

import jax
import jax.numpy as jnp
from jax.experimental import pallas as pl
from jax.experimental.pallas import tpu as pltpu


def _round_up(x, m):
    return ((x + m - 1) // m) * m


def _gap_kernel(x_ref, o_ref, acc_ref, *, inv_hw):
    # x_ref:   (TB, HW_TILE) tile of the flattened (rows, H*W) view.
    # o_ref:   (TB, 1) per-row mean; same output block across the reduction
    #          axis -> stays resident in VMEM (accumulator pattern).
    # acc_ref: (TB, 1) f32 VMEM scratch accumulator.
    k = pl.program_id(1)

    @pl.when(k == 0)
    def _():
        acc_ref[...] = jnp.zeros_like(acc_ref)

    x = x_ref[...].astype(jnp.float32)
    acc_ref[...] += jnp.sum(x, axis=-1, keepdims=True)

    @pl.when(k == pl.num_programs(1) - 1)
    def _():
        o_ref[...] = (acc_ref[...] * inv_hw).astype(o_ref.dtype)


@jax.jit
def global_avg_pool(x):
    """x: (N, C, H, W) -> (N, C), mean over dims [-2, -1]."""
    N, C, H, W = x.shape
    R = N * C
    HW = H * W

    # Lane-dense flattened view: rows = N*C, columns = H*W (contiguous in NCHW).
    x2 = x.reshape(R, HW)

    # --- Static tile selection (shapes are compile-time constants) ----------
    # Reduction-axis tile: multiple of 128 lanes, ~2048 columns per chunk.
    kt = max(1, -(-HW // 2048))                 # number of reduction chunks
    hw_tile = _round_up(-(-HW // kt), 128)      # lane-dense chunk width
    hw_pad = hw_tile * kt
    # Row tile: multiple of 8 sublanes, up to 512 rows per grid step.
    tb = min(_round_up(R, 8), 512)
    r_pad = _round_up(R, tb)

    # Zero-pad if needed: zero columns do not change the sum (we divide by the
    # true H*W); padded rows are sliced off after the call.
    if (r_pad != R) or (hw_pad != HW):
        x2 = jnp.pad(x2, ((0, r_pad - R), (0, hw_pad - HW)))

    grid = (r_pad // tb, hw_pad // hw_tile)     # (parallel rows, arbitrary reduction)

    out = pl.pallas_call(
        functools.partial(_gap_kernel, inv_hw=1.0 / float(HW)),
        out_shape=jax.ShapeDtypeStruct((r_pad, 1), x.dtype),
        grid=grid,
        in_specs=[pl.BlockSpec((tb, hw_tile), lambda r, k: (r, k))],
        out_specs=pl.BlockSpec((tb, 1), lambda r, k: (r, 0)),
        scratch_shapes=[pltpu.VMEM((tb, 1), jnp.float32)],
        compiler_params=pltpu.CompilerParams(
            dimension_semantics=("parallel", "arbitrary"),
            # Raised above the 16 MiB (v5e) / 32 MiB (v6e, v7x) scoped defaults,
            # but kept under v7x's 64 MiB physical VMEM.
            vmem_limit_bytes=48 * 1024 * 1024,
        ),
    )(x2)

    return out[:R, 0].reshape(N, C)


if __name__ == "__main__":
    key = jax.random.PRNGKey(0)
    # Small NCHW input consistent with the module's forward.
    x = jax.random.normal(key, (2, 4, 16, 16), dtype=jnp.float32)

    out = global_avg_pool(x)
    out = jax.block_until_ready(out)

    # Reference check (plain JAX) against the kernel result.
    ref = jnp.mean(x, axis=(-2, -1))
    assert out.shape == (2, 4), out.shape
    assert jnp.allclose(out, ref, atol=1e-5, rtol=1e-5), (out, ref)

    print("KERNEL_OK")
</pallas_src>

<mosaic_0001>
module attributes {stable_mosaic.version = 11 : i64} {
  func.func @_gap_kernel(%arg0: i32, %arg1: i32, %arg2: memref<8x256xf32, #tpu.memory_space<vmem>>, %arg3: memref<8x1xf32, #tpu.memory_space<vmem>>, %arg4: memref<8x1xf32, #tpu.memory_space<vmem>>) attributes {dimension_semantics = [#tpu.dimension_semantics<parallel>, #tpu.dimension_semantics<arbitrary>], iteration_bounds = array<i64: 1, 1>, scalar_prefetch = 0 : i64, scratch_operands = 1 : i64, tpu.core_type = #tpu.core_type<tc>, window_params = [{transform_indices = @transform_0, window_bounds = array<i64: 8, 256>}, {transform_indices = @transform_1, window_bounds = array<i64: 8, 1>}]} {
    %c0_i32 = arith.constant 0 : i32
    %0 = arith.cmpi eq, %arg1, %c0_i32 : i32
    %1 = arith.extui %0 : i1 to i32
    %c0_i32_0 = arith.constant 0 : i32
    %2 = arith.cmpi ne, %1, %c0_i32_0 : i32
    scf.if %2 {
      %cst_8 = arith.constant 0.000000e+00 : f32
      %12 = vector.broadcast %cst_8 : f32 to vector<8x1xf32>
      %c0_9 = arith.constant 0 : index
      %c0_10 = arith.constant 0 : index
      %13 = vector.load %arg4[%c0_9, %c0_10] : memref<8x1xf32, #tpu.memory_space<vmem>>, vector<8x1xf32>
      tpu.vector_store %arg4[%c0_9, %c0_10], %12 {strides = array<i32>} : memref<8x1xf32, #tpu.memory_space<vmem>>, vector<8x1xf32>,
    } else {
    }
    %c0 = arith.constant 0 : index
    %c0_1 = arith.constant 0 : index
    %3 = vector.load %arg2[%c0, %c0_1] : memref<8x256xf32, #tpu.memory_space<vmem>>, vector<8x256xf32>
    %c0_2 = arith.constant 0 : index
    %c0_3 = arith.constant 0 : index
    %4 = vector.load %arg4[%c0_2, %c0_3] : memref<8x1xf32, #tpu.memory_space<vmem>>, vector<8x1xf32>
    %cst = arith.constant dense<0.000000e+00> : vector<8xf32>
    %5 = vector.multi_reduction <add>, %3, %cst [1] : vector<8x256xf32> to vector<8xf32>
    %6 = vector.shape_cast %5 : vector<8xf32> to vector<8x1xf32>
    %7 = arith.addf %4, %6 : vector<8x1xf32>
    %c0_4 = arith.constant 0 : index
    %c0_5 = arith.constant 0 : index
    %8 = vector.load %arg4[%c0_4, %c0_5] : memref<8x1xf32, #tpu.memory_space<vmem>>, vector<8x1xf32>
    tpu.vector_store %arg4[%c0_4, %c0_5], %7 {strides = array<i32>} : memref<8x1xf32, #tpu.memory_space<vmem>>, vector<8x1xf32>,
    %c0_i32_6 = arith.constant 0 : i32
    %9 = arith.cmpi eq, %arg1, %c0_i32_6 : i32
    %10 = arith.extui %9 : i1 to i32
    %c0_i32_7 = arith.constant 0 : i32
    %11 = arith.cmpi ne, %10, %c0_i32_7 : i32
    scf.if %11 {
      %c0_8 = arith.constant 0 : index
      %c0_9 = arith.constant 0 : index
      %12 = vector.load %arg4[%c0_8, %c0_9] : memref<8x1xf32, #tpu.memory_space<vmem>>, vector<8x1xf32>
      %cst_10 = arith.constant 3.906250e-03 : f32
      %13 = vector.broadcast %cst_10 : f32 to vector<8x1xf32>
      %14 = arith.mulf %12, %13 : vector<8x1xf32>
      %c0_11 = arith.constant 0 : index
      %c0_12 = arith.constant 0 : index
      %15 = vector.load %arg3[%c0_11, %c0_12] : memref<8x1xf32, #tpu.memory_space<vmem>>, vector<8x1xf32>
      tpu.vector_store %arg3[%c0_11, %c0_12], %14 {strides = array<i32>} : memref<8x1xf32, #tpu.memory_space<vmem>>, vector<8x1xf32>,
    } else {
    }
    return
  }
  func.func @transform_0(%arg0: i32, %arg1: i32) -> (i32, i32) {
    %c0_i32 = arith.constant 0 : i32
    return %arg0, %arg1 : i32, i32
  }
  func.func @transform_1(%arg0: i32, %arg1: i32) -> (i32, i32) {
    %c0_i32 = arith.constant 0 : i32
    %c0_i32_0 = arith.constant 0 : i32
    return %arg0, %c0_i32 : i32, i32
  }
}

</mosaic_0001>

<llo_original>
// kernel: squeeze.1
$region0: #{squeeze.1}
  %s0 = inlined_call_operand.vmem [shape: f32[8], index: 0, kind: input, shape index: {}]
  %s1 = inlined_call_operand.hbm [shape: f32[2,4], index: 1, kind: output, shape index: {}]
  $region1: #{squeeze.1} parent=0
    #allocation0 [shape = 'u8[1024]{0}', space=vmem, size = 0x400, scoped, tag = 'operand span for operand 1']
    #allocation1 [shape = 's32[1]{0}', space=sflag, size = 0x4, scoped, tag = 'scoped memory for squeeze.1']
    #allocation2 [shape = 'u8[4096]{0}', space=vmem, size = 0x1000, scoped, tag = 'scoped mem for output reshape']
    #allocation3 [shape = 'u8[4096]{0}', space=vmem, size = 0x1000, scoped, tag = 'scoped mem for input reshape']
    %2 = vsyncpa [#allocation1], 0
    %s4 = sshllo.u32 0, 1
    %v5 = vld [vmem:[%s0] sm:%s4]
    %6 = vst [vmem:[#allocation3] sm:%s4] %v5
    %v7 = vld [vmem:[#allocation3] sm:$0x1]
    %vm8 = vcmask 31744
    %9 = vst.msk [vmem:[#allocation2] sm:$0x1] %vm8, %v7
    %v10 = vld [vmem:[#allocation3] sm:$0x1]
    %11 = vrot.lane.b32.xlu0 %v10, 124
    %v12 = vpop.permute.xlu0 %11
    %vm13 = vcmask 31744
    %s14 = scalar_lea.vmem [#allocation2], 1
    %15 = vst.msk [vmem:[%s14] sm:$0x1] %vm13, %v12
    %s17 = sshllo.u32 0, 2
    %v19 = vld [vmem:[#allocation2] sm:%s17]
    %s20 = sshllo.u32 0, 2
    %21 = vst [vmem:[#allocation0] sm:%s20] %v19
    %s23 = ssub.s32 32, 32
    %24 = vsyncadd [#allocation1], %s23
    %s26 = sshll.u32 [#allocation0], 4
    %s27 = int_to_ptr.vmem [resolvable:$true] %s26
    %29 = dma.vmem_to_hbm [thread:$0]  %s27, 32, %s1, [#allocation1]
    %30 = dma.done [#allocation1], 32
    %31 = vsyncpa [#allocation1], 1

// kernel: global_avg_pool.1
$region0: #{global_avg_pool.1}
  #allocation0 [shape = 'u32[]', space=smem, size = 0x4, offset = 0x4, fixed_abs, tag = 'smem constant byte address 0x4 - core index']
  #allocation1 [shape = 'u32[144,128]{1,0:T(1,128)}', space=vmem, size = 0x12000, scoped, tag = 'internal scratch']
  #allocation2 [shape = 'f32[8,1]{1,0:T(8,128)}', space=vmem, size = 0x1000, scoped, tag = 'scratch operand']
  %s0 = inlined_call_operand.vmem [shape: f32[8,256], index: 0, kind: input, shape index: {}]
  %s1 = inlined_call_operand.vmem [shape: f32[8,1], index: 1, kind: output, shape index: {}]
  %s2 = sld [smem:[#allocation0]]
  $region22: #{global_avg_pool.1} parent=0
    _
  %s4 = ssub.s32 1, %s2
  %s5 = scalar_select 0, %s4, %s2
  // Predicated region
  $region2: #{global_avg_pool.1} parent=0 // pred_check
    _
  $region3: #{global_avg_pool.1} parent=0 // pred_check_branch
    %7 = sbr.rel (0) target = $region5
  $region4: #{global_avg_pool.1} parent=0 // pred_region
    _
  $region5: #{global_avg_pool.1} parent=0 // pred_fallthru
    _
  %p8 = scmp.eq.s32.totalorder 0, 0
  // Predicated region
  $region6: #{global_avg_pool.1} parent=0 // pred_check
    %p9 = pneg %p8
  $region7: #{global_avg_pool.1} parent=0 // pred_check_branch
    %11 = sbr.rel (%p9) target = $region9
  $region8: #{global_avg_pool.1} parent=0 // pred_region
    %vm12 = vcmask 7168
    %13 = vst.msk [vmem:[#allocation2] sm:$0xff] %vm12, 0.0
  $region9: #{global_avg_pool.1} parent=0 // pred_fallthru
    _
  %v14 = vld [vmem:[%s0] sm:$0xff]
  %v15 = vld [vmem:[%s0 + $0x8] sm:$0xff]
  %v16 = vld [vmem:[#allocation2] sm:$0xff]
  %v17 = vadd.f32 %v14, %v15
  %18 = vadd.xlane.f32.xlu0 %v17
  %v19 = vpop.xlane.xlu0 %18
  %v20 = vadd.f32 %v16, %v19
  %vm21 = vcmask 7168
  %22 = vst.msk [vmem:[#allocation2] sm:$0xff] %vm21, %v20
  // Predicated region
  $region10: #{global_avg_pool.1} parent=0 // pred_check
    %p23 = pneg %p8
  $region11: #{global_avg_pool.1} parent=0 // pred_check_branch
    %25 = sbr.rel (%p23) target = $region13
  $region12: #{global_avg_pool.1} parent=0 // pred_region
    %v26 = vld [vmem:[#allocation2] sm:$0xff]
    %v27 = vmul.f32 %v26, 0.00390625
    %28 = vst.msk [vmem:[%s1] sm:$0xff] %vm21, %v27
  $region13: #{global_avg_pool.1} parent=0 // pred_fallthru
    _
  // Predicated region
  $region14: #{global_avg_pool.1} parent=0 // pred_check
    _
  $region15: #{global_avg_pool.1} parent=0 // pred_check_branch
    %30 = sbr.rel (0) target = $region17
  $region16: #{global_avg_pool.1} parent=0 // pred_region
    _
  $region17: #{global_avg_pool.1} parent=0 // pred_fallthru
    _
  // Predicated region
  $region18: #{global_avg_pool.1} parent=0 // pred_check
    _
  $region19: #{global_avg_pool.1} parent=0 // pred_check_branch
    %32 = sbr.rel (0) target = $region21
  $region20: #{global_avg_pool.1} parent=0 // pred_region
    _
  $region21: #{global_avg_pool.1} parent=0 // pred_fallthru
    _

</llo_original>
